<compile_context>
chip_gen: v5e
topology: v5e:2x2
jax: 0.10.0
libtpu: 0.0.40
codegen_flags: <defaults>
</compile_context>

<pallas_src>
import functools

import jax
import jax.numpy as jnp
from jax.experimental import pallas as pl
from jax.experimental.pallas import tpu as pltpu

LEAKY_SLOPE = 0.01   # F.leaky_relu default negative_slope
BN_EPS = 1e-5        # nn.BatchNorm1d default eps

# Packed weight-slab layout (BN already folded into W/b at pack time).
# (row_off, col_off, padded_in, padded_out) per layer.  Layers 4 and 5 are
# co-located in the unused cols 128:256 of layer 3's row block; every offset
# is a multiple of 16 sublanes / 128 lanes so all static slices stay
# tile-aligned for both f32 and bf16 slabs.
#   real dims:     24->200         200->200          200->100
LAYERS = ((0, 0, 32, 256), (32, 0, 256, 256), (288, 0, 256, 128),
          #    100->64               64->5
          (288, 128, 128, 128), (416, 128, 128, 128))
W_ROWS = 544          # 32 + 256 + 256 rows (was 896 before the repack)
W_COLS = 256          # widest padded output
B_ROWS = 8            # 5 bias rows padded to a full sublane tile
IN_PAD = 32           # layer-1 row budget (state_size must be <= 32)
OUT_PAD = 128         # lane-dense output width (action_size must be <= 128)


def _round_up(n, m):
    return (n + m - 1) // m * m


def _device_kind():
    try:
        return jax.devices()[0].device_kind.lower()
    except Exception:
        return ""


def _act_dtype(w_dtype, kind):
    """bf16 activation path only where the VPU is bf16-capable (v6e/v7x)."""
    if w_dtype == jnp.bfloat16 and "v5" not in kind:
        return jnp.bfloat16
    return jnp.float32


def _pick_tiling(batch_p, kind):
    """Batch tile size per generation.

    v5e/v6e have a single TensorCore, so extra grid steps are pure overhead:
    use the biggest sublane-aligned tile (cap 1024).  v7x has two TensorCores
    that only get used if there are >= 2 parallel grid steps, so split
    replay-sized batches into at least two tiles (cap 256)."""
    two_tc = "v7" in kind
    cap = 256 if two_tc else 1024
    if batch_p <= cap:
        if two_tc and batch_p >= 128:
            tile_b = _round_up(batch_p // 2, 8)      # keep both TCs busy
        else:
            tile_b = batch_p                         # single tile (batch=8 path)
    else:
        tile_b = cap
    batch_p = _round_up(batch_p, tile_b)
    return tile_b, batch_p


def _make_kernel(k1, act_dtype, w_dtype):
    """Fused 5-layer MLP (BN folded into W/b).  `k1` is the real layer-1
    contraction width (raw state width, <= IN_PAD); all slices are static."""

    def kernel(x_ref, w_ref, b_ref, o_ref):
        h = x_ref[...]                                        # (TB, k1)
        if h.dtype != w_dtype:
            h = h.astype(w_dtype)
        for li, (roff, coff, fin, fout) in enumerate(LAYERS):
            if li == 0:
                fin = k1                                      # only real state rows
            w = w_ref[roff:roff + fin, coff:coff + fout]      # static, tile-aligned
            z = jnp.dot(h, w, preferred_element_type=jnp.float32)
            z = z + b_ref[li:li + 1, 0:fout]                  # f32 bias add
            if li < len(LAYERS) - 1:
                if z.dtype != act_dtype:
                    z = z.astype(act_dtype)                   # bf16 on v6e/v7x
                h = jnp.where(z > 0, z, LEAKY_SLOPE * z)      # LeakyReLU
                if h.dtype != w_dtype:
                    h = h.astype(w_dtype)                     # only on v5e+bf16 slab
                # Dropout: identity in eval mode.
            else:
                o_ref[...] = z.astype(o_ref.dtype)            # fc9: no act/BN
    return kernel


@functools.partial(jax.jit, static_argnames=("action_size",))
def dqn_forward(x, w_slab, b_slab, action_size):
    batch, state = x.shape
    assert state <= IN_PAD, "state_size must be <= 32"
    assert action_size <= OUT_PAD, "action_size must be <= 128"

    kind = _device_kind()
    batch_p = _round_up(batch, 8)
    tile_b, batch_p = _pick_tiling(batch_p, kind)
    n_tiles = batch_p // tile_b

    # No feature-dim padding at all; batch padding only when the batch is not
    # already aligned (never for the batch=8 serving path -> zero extra ops).
    if batch_p != batch:
        x = jnp.pad(x, ((0, batch_p - batch), (0, 0)))

    w_dtype = w_slab.dtype
    act_dtype = _act_dtype(w_dtype, kind)

    flops = 2 * batch_p * (state * 256 + 256 * 256 + 256 * 128
                           + 128 * 128 + 128 * 128)
    bytes_accessed = (x.size * x.dtype.itemsize
                      + w_slab.size * w_slab.dtype.itemsize
                      + b_slab.size * b_slab.dtype.itemsize
                      + batch_p * OUT_PAD * 4)

    out = pl.pallas_call(
        _make_kernel(state, act_dtype, w_dtype),
        out_shape=jax.ShapeDtypeStruct((batch_p, OUT_PAD), jnp.float32),
        grid=(n_tiles,),
        in_specs=[
            pl.BlockSpec((tile_b, state), lambda i: (i, 0)),    # activations
            pl.BlockSpec((W_ROWS, W_COLS), lambda i: (0, 0)),   # weights (resident)
            pl.BlockSpec((B_ROWS, W_COLS), lambda i: (0, 0)),   # biases (resident)
        ],
        out_specs=pl.BlockSpec((tile_b, OUT_PAD), lambda i: (i, 0)),
        compiler_params=pltpu.CompilerParams(
            dimension_semantics=("parallel",),
            vmem_limit_bytes=(16 if tile_b <= 256 else 32) * 1024 * 1024,
        ),
        cost_estimate=pl.CostEstimate(
            flops=flops, transcendentals=0, bytes_accessed=bytes_accessed),
    )(x, w_slab, b_slab)

    return out[:batch, :action_size]


def pack_params(params, weight_dtype=jnp.bfloat16):
    """Fold eval-mode BatchNorm into the Linear layers and pack everything into
    one lane-padded weight slab + one bias slab (done once, wrapper side)."""
    w_slab = jnp.zeros((W_ROWS, W_COLS), jnp.float32)
    b_slab = jnp.zeros((B_ROWS, W_COLS), jnp.float32)
    for li, (roff, coff, fin_pad, fout_pad) in enumerate(LAYERS):
        w = params[f"w{li + 1}"]                    # [in, out] (pre-transposed)
        b = params[f"b{li + 1}"].reshape(-1)
        if li < 4:                                  # layers with BN
            g = params[f"g{li + 1}"].reshape(-1)
            be = params[f"be{li + 1}"].reshape(-1)
            m = params[f"m{li + 1}"].reshape(-1)
            v = params[f"v{li + 1}"].reshape(-1)
            s = g * jax.lax.rsqrt(v + BN_EPS)       # per-output-column scale
            w = w * s[None, :]
            b = (b - m) * s + be
        fi, fo = w.shape
        assert fi <= fin_pad and fo <= fout_pad
        w_slab = w_slab.at[roff:roff + fi, coff:coff + fo].set(w)
        b_slab = b_slab.at[li, :fo].set(b)
    return w_slab.astype(weight_dtype), b_slab      # biases stay f32


def init_params(key, state_size, action_size):
    """Deterministic synthetic parameters mirroring DQN_old.__init__ shapes."""
    dims = [(state_size, 200), (200, 200), (200, 100), (100, 64),
            (64, action_size)]
    params = {}
    keys = jax.random.split(key, 32)
    ki = 0
    for idx, (fan_in, fan_out) in enumerate(dims, start=1):
        # kaiming_normal_ (fan_in, gain sqrt(2)); stored pre-transposed [in, out]
        std = (2.0 / fan_in) ** 0.5
        w = std * jax.random.normal(keys[ki], (fan_in, fan_out), jnp.float32); ki += 1
        bound = 1.0 / (fan_in ** 0.5)
        b = jax.random.uniform(keys[ki], (1, fan_out), jnp.float32, -bound, bound); ki += 1
        params[f"w{idx}"] = w
        params[f"b{idx}"] = b
    # BN params for layers 1..4 (widths 200, 200, 100, 64): nontrivial, deterministic
    for idx, width in enumerate([200, 200, 100, 64], start=1):
        params[f"g{idx}"] = 1.0 + 0.1 * jax.random.normal(keys[ki], (1, width), jnp.float32); ki += 1
        params[f"be{idx}"] = 0.1 * jax.random.normal(keys[ki], (1, width), jnp.float32); ki += 1
        params[f"m{idx}"] = 0.05 * jax.random.normal(keys[ki], (1, width), jnp.float32); ki += 1
        params[f"v{idx}"] = 1.0 + 0.1 * jax.random.uniform(keys[ki], (1, width), jnp.float32); ki += 1
    return params


def reference_forward(x, p):
    """Pure-JAX reference of the original module (eval mode, f32)."""
    h = x
    for idx in range(1, 5):
        z = h @ p[f"w{idx}"] + p[f"b{idx}"]
        zn = (z - p[f"m{idx}"]) * jax.lax.rsqrt(p[f"v{idx}"] + BN_EPS)
        zn = zn * p[f"g{idx}"] + p[f"be{idx}"]
        h = jnp.where(zn > 0, zn, LEAKY_SLOPE * zn)
    return h @ p["w5"] + p["b5"]


def reference_forward_packed(x, w_slab, b_slab, action_size):
    """Pure-JAX reference using the packed (folded/repacked) slabs — same
    arithmetic path as the kernel, for precision-matched parity checks."""
    batch, state = x.shape
    act_dtype = _act_dtype(w_slab.dtype, _device_kind())
    h = x.astype(w_slab.dtype)
    out = None
    for li, (roff, coff, fin, fout) in enumerate(LAYERS):
        if li == 0:
            fin = state
        w = w_slab[roff:roff + fin, coff:coff + fout]
        z = jnp.dot(h, w, preferred_element_type=jnp.float32)
        z = z + b_slab[li:li + 1, 0:fout]
        if li < len(LAYERS) - 1:
            z = z.astype(act_dtype)
            h = jnp.where(z > 0, z, LEAKY_SLOPE * z).astype(w_slab.dtype)
        else:
            out = z
    return out[:, :action_size]


if __name__ == "__main__":
    STATE_SIZE = 24     # LIDAR-style state vector
    ACTION_SIZE = 5
    BATCH = 8

    key = jax.random.PRNGKey(0)
    k_params, k_x = jax.random.split(key)
    params = init_params(k_params, STATE_SIZE, ACTION_SIZE)
    x = jax.random.normal(k_x, (BATCH, STATE_SIZE), jnp.float32)

    ref = reference_forward(x, params)

    # --- f32 slabs: exact eval-mode parity with the original module ---------
    w32, b32 = pack_params(params, jnp.float32)
    out32 = jax.block_until_ready(dqn_forward(x, w32, b32, ACTION_SIZE))
    assert out32.shape == (BATCH, ACTION_SIZE)
    assert jnp.allclose(out32, ref, atol=1e-4, rtol=1e-4), "f32 mismatch vs reference"

    # --- bf16 weight slab (the default: halves the dominant weight DMA) -----
    wbf, bbf = pack_params(params)                      # bf16 by default now
    outbf = jax.block_until_ready(dqn_forward(x, wbf, bbf, ACTION_SIZE))
    ref_bf = reference_forward_packed(x, wbf, bbf, ACTION_SIZE)
    assert outbf.shape == (BATCH, ACTION_SIZE)
    # precision-matched check (same bf16 folded weights / activation path)
    assert jnp.allclose(outbf, ref_bf, atol=2e-3, rtol=2e-3), "bf16 kernel mismatch"
    # informational: bf16 deviation from exact f32 semantics + greedy-action
    # agreement (review: validate argmax before defaulting to bf16/fp8)
    _bf16_max_abs_err = float(jnp.max(jnp.abs(outbf - ref)))
    _argmax_agrees = bool(jnp.all(jnp.argmax(outbf, -1) == jnp.argmax(ref, -1)))

    print("KERNEL_OK")
</pallas_src>

<mosaic_0001>
module attributes {stable_mosaic.version = 11 : i64} {
  func.func @kernel(%arg0: i32, %arg1: memref<8x24xf32, #tpu.memory_space<vmem>>, %arg2: memref<544x256xf32, #tpu.memory_space<vmem>>, %arg3: memref<8x256xf32, #tpu.memory_space<vmem>>, %arg4: memref<8x128xf32, #tpu.memory_space<vmem>>) attributes {dimension_semantics = [#tpu.dimension_semantics<parallel>], iteration_bounds = array<i64: 1>, scalar_prefetch = 0 : i64, scratch_operands = 0 : i64, tpu.core_type = #tpu.core_type<tc>, window_params = [{transform_indices = @transform_0, window_bounds = array<i64: 8, 24>}, {pipeline_mode = #tpu.pipeline_mode<synchronous>, transform_indices = @transform_1, window_bounds = array<i64: 544, 256>}, {pipeline_mode = #tpu.pipeline_mode<synchronous>, transform_indices = @transform_2, window_bounds = array<i64: 8, 256>}, {transform_indices = @transform_3, window_bounds = array<i64: 8, 128>}]} {
    %c0 = arith.constant 0 : index
    %c0_0 = arith.constant 0 : index
    %0 = vector.load %arg1[%c0, %c0_0] : memref<8x24xf32, #tpu.memory_space<vmem>>, vector<8x24xf32>
    %c0_1 = arith.constant 0 : index
    %c0_2 = arith.constant 0 : index
    %1 = vector.load %arg2[%c0_1, %c0_2] : memref<544x256xf32, #tpu.memory_space<vmem>>, vector<24x256xf32>
    %cst = arith.constant dense<0.000000e+00> : vector<8x256xf32>
    %2 = tpu.matmul %0, %1, %cst {dimension_numbers = #tpu.dot_dimension_numbers<[1], [0], [0], [1], [0, 0, 1, 1], [], []>} : vector<8x24xf32>, vector<24x256xf32>, vector<8x256xf32> -> vector<8x256xf32>
    %c0_3 = arith.constant 0 : index
    %c0_4 = arith.constant 0 : index
    %3 = vector.load %arg3[%c0_3, %c0_4] : memref<8x256xf32, #tpu.memory_space<vmem>>, vector<1x256xf32>
    %4 = vector.broadcast %3 : vector<1x256xf32> to vector<8x256xf32>
    %5 = arith.addf %2, %4 : vector<8x256xf32>
    %cst_5 = arith.constant 0.000000e+00 : f32
    %6 = vector.broadcast %cst_5 : f32 to vector<8x256xf32>
    %7 = arith.cmpf ogt, %5, %6 : vector<8x256xf32>
    %cst_6 = arith.constant 0.00999999977 : f32
    %8 = vector.broadcast %cst_6 : f32 to vector<8x256xf32>
    %9 = arith.mulf %8, %5 : vector<8x256xf32>
    %10 = arith.select %7, %5, %9 : vector<8x256xi1>, vector<8x256xf32>
    %c32 = arith.constant 32 : index
    %c0_7 = arith.constant 0 : index
    %11 = vector.load %arg2[%c32, %c0_7] : memref<544x256xf32, #tpu.memory_space<vmem>>, vector<256x256xf32>
    %cst_8 = arith.constant dense<0.000000e+00> : vector<8x256xf32>
    %12 = tpu.matmul %10, %11, %cst_8 {dimension_numbers = #tpu.dot_dimension_numbers<[1], [0], [0], [1], [0, 0, 1, 1], [], []>} : vector<8x256xf32>, vector<256x256xf32>, vector<8x256xf32> -> vector<8x256xf32>
    %c1 = arith.constant 1 : index
    %c0_9 = arith.constant 0 : index
    %13 = vector.load %arg3[%c1, %c0_9] : memref<8x256xf32, #tpu.memory_space<vmem>>, vector<1x256xf32>
    %14 = vector.broadcast %13 : vector<1x256xf32> to vector<8x256xf32>
    %15 = arith.addf %12, %14 : vector<8x256xf32>
    %cst_10 = arith.constant 0.000000e+00 : f32
    %16 = vector.broadcast %cst_10 : f32 to vector<8x256xf32>
    %17 = arith.cmpf ogt, %15, %16 : vector<8x256xf32>
    %cst_11 = arith.constant 0.00999999977 : f32
    %18 = vector.broadcast %cst_11 : f32 to vector<8x256xf32>
    %19 = arith.mulf %18, %15 : vector<8x256xf32>
    %20 = arith.select %17, %15, %19 : vector<8x256xi1>, vector<8x256xf32>
    %c288 = arith.constant 288 : index
    %c0_12 = arith.constant 0 : index
    %21 = vector.load %arg2[%c288, %c0_12] : memref<544x256xf32, #tpu.memory_space<vmem>>, vector<256x128xf32>
    %cst_13 = arith.constant dense<0.000000e+00> : vector<8x128xf32>
    %22 = tpu.matmul %20, %21, %cst_13 {dimension_numbers = #tpu.dot_dimension_numbers<[1], [0], [0], [1], [0, 0, 1, 1], [], []>} : vector<8x256xf32>, vector<256x128xf32>, vector<8x128xf32> -> vector<8x128xf32>
    %c2 = arith.constant 2 : index
    %c0_14 = arith.constant 0 : index
    %23 = vector.load %arg3[%c2, %c0_14] : memref<8x256xf32, #tpu.memory_space<vmem>>, vector<1x128xf32>
    %24 = vector.broadcast %23 : vector<1x128xf32> to vector<8x128xf32>
    %25 = arith.addf %22, %24 : vector<8x128xf32>
    %cst_15 = arith.constant 0.000000e+00 : f32
    %26 = vector.broadcast %cst_15 : f32 to vector<8x128xf32>
    %27 = arith.cmpf ogt, %25, %26 : vector<8x128xf32>
    %cst_16 = arith.constant 0.00999999977 : f32
    %28 = vector.broadcast %cst_16 : f32 to vector<8x128xf32>
    %29 = arith.mulf %28, %25 : vector<8x128xf32>
    %30 = arith.select %27, %25, %29 : vector<8x128xi1>, vector<8x128xf32>
    %c288_17 = arith.constant 288 : index
    %c128 = arith.constant 128 : index
    %31 = vector.load %arg2[%c288_17, %c128] : memref<544x256xf32, #tpu.memory_space<vmem>>, vector<128x128xf32>
    %cst_18 = arith.constant dense<0.000000e+00> : vector<8x128xf32>
    %32 = tpu.matmul %30, %31, %cst_18 {dimension_numbers = #tpu.dot_dimension_numbers<[1], [0], [0], [1], [0, 0, 1, 1], [], []>} : vector<8x128xf32>, vector<128x128xf32>, vector<8x128xf32> -> vector<8x128xf32>
    %c3 = arith.constant 3 : index
    %c0_19 = arith.constant 0 : index
    %33 = vector.load %arg3[%c3, %c0_19] : memref<8x256xf32, #tpu.memory_space<vmem>>, vector<1x128xf32>
    %34 = vector.broadcast %33 : vector<1x128xf32> to vector<8x128xf32>
    %35 = arith.addf %32, %34 : vector<8x128xf32>
    %cst_20 = arith.constant 0.000000e+00 : f32
    %36 = vector.broadcast %cst_20 : f32 to vector<8x128xf32>
    %37 = arith.cmpf ogt, %35, %36 : vector<8x128xf32>
    %cst_21 = arith.constant 0.00999999977 : f32
    %38 = vector.broadcast %cst_21 : f32 to vector<8x128xf32>
    %39 = arith.mulf %38, %35 : vector<8x128xf32>
    %40 = arith.select %37, %35, %39 : vector<8x128xi1>, vector<8x128xf32>
    %c416 = arith.constant 416 : index
    %c128_22 = arith.constant 128 : index
    %41 = vector.load %arg2[%c416, %c128_22] : memref<544x256xf32, #tpu.memory_space<vmem>>, vector<128x128xf32>
    %cst_23 = arith.constant dense<0.000000e+00> : vector<8x128xf32>
    %42 = tpu.matmul %40, %41, %cst_23 {dimension_numbers = #tpu.dot_dimension_numbers<[1], [0], [0], [1], [0, 0, 1, 1], [], []>} : vector<8x128xf32>, vector<128x128xf32>, vector<8x128xf32> -> vector<8x128xf32>
    %c4 = arith.constant 4 : index
    %c0_24 = arith.constant 0 : index
    %43 = vector.load %arg3[%c4, %c0_24] : memref<8x256xf32, #tpu.memory_space<vmem>>, vector<1x128xf32>
    %44 = vector.broadcast %43 : vector<1x128xf32> to vector<8x128xf32>
    %45 = arith.addf %42, %44 : vector<8x128xf32>
    %c0_25 = arith.constant 0 : index
    %c0_26 = arith.constant 0 : index
    %46 = vector.load %arg4[%c0_25, %c0_26] : memref<8x128xf32, #tpu.memory_space<vmem>>, vector<8x128xf32>
    tpu.vector_store %arg4[%c0_25, %c0_26], %45 {strides = array<i32>} : memref<8x128xf32, #tpu.memory_space<vmem>>, vector<8x128xf32>,
    return
  }
  func.func @transform_0(%arg0: i32) -> (i32, i32) {
    %c0_i32 = arith.constant 0 : i32
    %c0_i32_0 = arith.constant 0 : i32
    return %arg0, %c0_i32 : i32, i32
  }
  func.func @transform_1(%arg0: i32) -> (i32, i32) {
    %c0_i32 = arith.constant 0 : i32
    %c0_i32_0 = arith.constant 0 : i32
    %c0_i32_1 = arith.constant 0 : i32
    return %c0_i32, %c0_i32_0 : i32, i32
  }
  func.func @transform_2(%arg0: i32) -> (i32, i32) {
    %c0_i32 = arith.constant 0 : i32
    %c0_i32_0 = arith.constant 0 : i32
    %c0_i32_1 = arith.constant 0 : i32
    return %c0_i32, %c0_i32_0 : i32, i32
  }
  func.func @transform_3(%arg0: i32) -> (i32, i32) {
    %c0_i32 = arith.constant 0 : i32
    %c0_i32_0 = arith.constant 0 : i32
    return %arg0, %c0_i32 : i32, i32
  }
}

</mosaic_0001>

<llo_original>
// kernel: dqn_forward.1
$region0: #{dqn_forward.1}
  #allocation0 [shape = 'u32[]', space=smem, size = 0x4, offset = 0x4, fixed_abs, tag = 'smem constant byte address 0x4 - core index']
  #allocation1 [shape = 'u32[72,128]{1,0:T(1,128)}', space=vmem, size = 0x9000, scoped, tag = 'internal scratch']
  %s0 = inlined_call_operand.hbm [shape: f32[8,24], index: 0, kind: input, shape index: {}]
  %s1 = inlined_call_operand.hbm [shape: f32[544,256], index: 1, kind: input, shape index: {}]
  %s2 = inlined_call_operand.hbm [shape: f32[8,256], index: 2, kind: input, shape index: {}]
  %s3 = inlined_call_operand.hbm [shape: f32[8,128], index: 3, kind: output, shape index: {}]
  %s4 = sld [smem:[#allocation0]]
  $region34: #{dqn_forward.1} parent=0
    _
  %s6 = ssub.s32 1, %s4
  %s7 = scalar_select 0, %s6, %s4
  $region1: #{dqn_forward.1} parent=0
    #allocation2 [shape = 'u8[4096]{0}', space=vmem, size = 0x1000, scoped, tag = 'input window, operand 0, single buffered']
    #allocation3 [shape = 's32[1]{0}', space=sflag, size = 0x4, scoped, tag = 'scoped memory for dqn_forward.1']
    #allocation4 [shape = 's32[1]{0}', space=sflag, size = 0x4, scoped, tag = 'scoped memory for dqn_forward.1']
    #allocation5 [shape = 'u8[557056]{0}', space=vmem, size = 0x88000, scoped, tag = 'input window, operand 1, single buffered']
    #allocation6 [shape = 's32[1]{0}', space=sflag, size = 0x4, scoped, tag = 'scoped memory for dqn_forward.1']
    #allocation7 [shape = 'u8[8192]{0}', space=vmem, size = 0x2000, scoped, tag = 'input window, operand 2, single buffered']
    #allocation8 [shape = 'u8[4096]{0}', space=vmem, size = 0x1000, scoped, tag = 'output window, operand 0, single buffered']
    %8 = vsyncpa [#allocation3], 0
    %9 = vsyncpa [#allocation6], 0
    %10 = vsyncpa [#allocation4], 0
    // Predicated region
    $region2: #{dqn_forward.1} parent=1 // pred_check
      _
    $region3: #{dqn_forward.1} parent=1 // pred_check_branch
      %12 = sbr.rel (0) target = $region5
    $region4: #{dqn_forward.1} parent=1 // pred_region
      %14 = vsyncadd [#allocation3], 0
      %s16 = sshll.u32 %s0, 4
      %s17 = int_to_ptr.hbm [resolvable:$true] %s16
      %s18 = sshll.u32 [#allocation2], 4
      %s19 = int_to_ptr.vmem [resolvable:$true] %s18
      %21 = dma.hbm_to_vmem [thread:$0]  %s17, 128, %s19, [#allocation3]
    $region5: #{dqn_forward.1} parent=1 // pred_fallthru
      _
    // Predicated region
    $region6: #{dqn_forward.1} parent=1 // pred_check
      _
    $region7: #{dqn_forward.1} parent=1 // pred_check_branch
      %23 = sbr.rel (0) target = $region9
    $region8: #{dqn_forward.1} parent=1 // pred_region
      %25 = vsyncadd [#allocation6], 0
      %s26 = sshll.u32 %s1, 4
      %s27 = int_to_ptr.hbm [resolvable:$true] %s26
      %s28 = sshll.u32 [#allocation5], 4
      %s29 = int_to_ptr.vmem [resolvable:$true] %s28
      %34 = dma.hbm_to_vmem [thread:$0]  %s27, 17408, %s29, [#allocation6], 256, 256, 16
    $region9: #{dqn_forward.1} parent=1 // pred_fallthru
      _
    // Predicated region
    $region10: #{dqn_forward.1} parent=1 // pred_check
      _
    $region11: #{dqn_forward.1} parent=1 // pred_check_branch
      %36 = sbr.rel (0) target = $region13
    $region12: #{dqn_forward.1} parent=1 // pred_region
      %38 = vsyncadd [#allocation6], 0
      %s40 = sshll.u32 %s2, 4
      %s41 = int_to_ptr.hbm [resolvable:$true] %s40
      %s42 = sshll.u32 [#allocation7], 4
      %s43 = int_to_ptr.vmem [resolvable:$true] %s42
      %45 = dma.hbm_to_vmem [thread:$0]  %s41, 256, %s43, [#allocation6]
    $region13: #{dqn_forward.1} parent=1 // pred_fallthru
      _
    // Predicated region
    $region14: #{dqn_forward.1} parent=1 // pred_check
      _
    $region15: #{dqn_forward.1} parent=1 // pred_check_branch
      %47 = sbr.rel (0) target = $region17
    $region16: #{dqn_forward.1} parent=1 // pred_region
      %49 = dma.done [#allocation3], 128
    $region17: #{dqn_forward.1} parent=1 // pred_fallthru
      _
    // Predicated region
    $region18: #{dqn_forward.1} parent=1 // pred_check
      _
    $region19: #{dqn_forward.1} parent=1 // pred_check_branch
      %51 = sbr.rel (0) target = $region21
    $region20: #{dqn_forward.1} parent=1 // pred_region
      %53 = dma.done [#allocation6], 17408
    $region21: #{dqn_forward.1} parent=1 // pred_fallthru
      _
    // Predicated region
    $region22: #{dqn_forward.1} parent=1 // pred_check
      _
    $region23: #{dqn_forward.1} parent=1 // pred_check_branch
      %55 = sbr.rel (0) target = $region25
    $region24: #{dqn_forward.1} parent=1 // pred_region
      %57 = dma.done [#allocation6], 256
    $region25: #{dqn_forward.1} parent=1 // pred_fallthru
      _
    %v58 = vld [vmem:[#allocation2] sm:$0xff]
    %v59 = vld [vmem:[#allocation5] sm:$0xff]
    %v60 = vld [vmem:[#allocation5 + $0x8] sm:$0xff]
    %v61 = vld [vmem:[#allocation5 + $0x10] sm:$0xff]
    %v62 = vld [vmem:[#allocation5 + $0x18] sm:$0xff]
    %v63 = vld [vmem:[#allocation5 + $0x20] sm:$0xff]
    %v64 = vld [vmem:[#allocation5 + $0x28] sm:$0xff]
    %v65 = vld [vmem:[#allocation7] ss:$8 sm:$0x3]
    %v67 = vperm.slane %v65, 0
    %v68 = vperm.slane %v65, 1
    %vm71 = vcmask 195584
    %v73 = vsel %vm71, %v58, 0
    %75 = vmatpush.msra.mxu0 0.0
    %76 = vmatpush.msra.mxu0 0.0
    %77 = vmatpush.msra.mxu0 0.0
    %78 = vmatpush.msra.mxu0 0.0
    %79 = vmatpush.msra.mxu0 0.0
    %80 = vmatpush.msra.mxu0 0.0
    %81 = vmatpush.msra.mxu0 0.0
    %82 = vmatpush.msra.mxu0 0.0
    %83 = vmatpush.msra.mxu0 0.0
    %84 = vmatpush.msra.mxu0 0.0
    %85 = vmatpush.msra.mxu0 0.0
    %86 = vmatpush.msra.mxu0 0.0
    %87 = vmatpush.msra.mxu0 0.0
    %88 = vmatpush.msra.mxu0 %v63
    %89 = vmatpush.msra.mxu0 %v61
    %90 = vmatpush.msra.mxu0 %v59
    %91 = vmatmul.f32.gmra.mxu0 %v73
    %v92 = vpop.f32.mrf.mxu0
    %v93 = vadd.f32 %v67, %v92
    %94 = vdwg.mxu0
    %95 = vmatpush.msra.mxu0 0.0
    %96 = vmatpush.msra.mxu0 0.0
    %97 = vmatpush.msra.mxu0 0.0
    %98 = vmatpush.msra.mxu0 0.0
    %99 = vmatpush.msra.mxu0 0.0
    %100 = vmatpush.msra.mxu0 0.0
    %101 = vmatpush.msra.mxu0 0.0
    %102 = vmatpush.msra.mxu0 0.0
    %103 = vmatpush.msra.mxu0 0.0
    %104 = vmatpush.msra.mxu0 0.0
    %105 = vmatpush.msra.mxu0 0.0
    %106 = vmatpush.msra.mxu0 0.0
    %107 = vmatpush.msra.mxu0 0.0
    %108 = vmatpush.msra.mxu0 %v64
    %109 = vmatpush.msra.mxu0 %v62
    %110 = vmatpush.msra.mxu0 %v60
    %111 = vmatmul.f32.gmra.mxu0 %v73
    %v112 = vpop.f32.mrf.mxu0
    %v113 = vadd.f32 %v68, %v112
    %114 = vdwg.mxu0
    %vm115 = vcmp.gt.f32.partialorder %v93, 0.0
    %vm116 = vcmp.gt.f32.partialorder %v113, 0.0
    %v117 = vmul.f32 %v93, 0.01
    %v118 = vmul.f32 %v113, 0.01
    %v119 = vsel %vm115, %v93, %v117
    %v120 = vsel %vm116, %v113, %v118
    %v121 = vld [vmem:[#allocation5 + $0x40] sm:$0xff]
    %v122 = vld [vmem:[#allocation5 + $0x48] sm:$0xff]
    %v123 = vld [vmem:[#allocation5 + $0x50] sm:$0xff]
    %v124 = vld [vmem:[#allocation5 + $0x58] sm:$0xff]
    %v125 = vld [vmem:[#allocation5 + $0x60] sm:$0xff]
    %v126 = vld [vmem:[#allocation5 + $0x68] sm:$0xff]
    %v127 = vld [vmem:[#allocation5 + $0x70] sm:$0xff]
    %v128 = vld [vmem:[#allocation5 + $0x78] sm:$0xff]
    %v129 = vld [vmem:[#allocation5 + $0x80] sm:$0xff]
    %v130 = vld [vmem:[#allocation5 + $0x88] sm:$0xff]
    %v131 = vld [vmem:[#allocation5 + $0x90] sm:$0xff]
    %v132 = vld [vmem:[#allocation5 + $0x98] sm:$0xff]
    %v133 = vld [vmem:[#allocation5 + $0xa0] sm:$0xff]
    %v134 = vld [vmem:[#allocation5 + $0xa8] sm:$0xff]
    %v135 = vld [vmem:[#allocation5 + $0xb0] sm:$0xff]
    %v136 = vld [vmem:[#allocation5 + $0xb8] sm:$0xff]
    %v137 = vld [vmem:[#allocation5 + $0xc0] sm:$0xff]
    %v138 = vld [vmem:[#allocation5 + $0xc8] sm:$0xff]
    %v139 = vld [vmem:[#allocation5 + $0xd0] sm:$0xff]
    %v140 = vld [vmem:[#allocation5 + $0xd8] sm:$0xff]
    %v141 = vld [vmem:[#allocation5 + $0xe0] sm:$0xff]
    %v142 = vld [vmem:[#allocation5 + $0xe8] sm:$0xff]
    %v143 = vld [vmem:[#allocation5 + $0xf0] sm:$0xff]
    %v144 = vld [vmem:[#allocation5 + $0xf8] sm:$0xff]
    %v145 = vld [vmem:[#allocation5 + $0x100] sm:$0xff]
    %v146 = vld [vmem:[#allocation5 + $0x108] sm:$0xff]
    %v147 = vld [vmem:[#allocation5 + $0x110] sm:$0xff]
    %v148 = vld [vmem:[#allocation5 + $0x118] sm:$0xff]
    %v149 = vld [vmem:[#allocation5 + $0x120] sm:$0xff]
    %v150 = vld [vmem:[#allocation5 + $0x128] sm:$0xff]
    %v151 = vld [vmem:[#allocation5 + $0x130] sm:$0xff]
    %v152 = vld [vmem:[#allocation5 + $0x138] sm:$0xff]
    %v153 = vld [vmem:[#allocation5 + $0x140] sm:$0xff]
    %v154 = vld [vmem:[#allocation5 + $0x148] sm:$0xff]
    %v155 = vld [vmem:[#allocation5 + $0x150] sm:$0xff]
    %v156 = vld [vmem:[#allocation5 + $0x158] sm:$0xff]
    %v157 = vld [vmem:[#allocation5 + $0x160] sm:$0xff]
    %v158 = vld [vmem:[#allocation5 + $0x168] sm:$0xff]
    %v159 = vld [vmem:[#allocation5 + $0x170] sm:$0xff]
    %v160 = vld [vmem:[#allocation5 + $0x178] sm:$0xff]
    %v161 = vld [vmem:[#allocation5 + $0x180] sm:$0xff]
    %v162 = vld [vmem:[#allocation5 + $0x188] sm:$0xff]
    %v163 = vld [vmem:[#allocation5 + $0x190] sm:$0xff]
    %v164 = vld [vmem:[#allocation5 + $0x198] sm:$0xff]
    %v165 = vld [vmem:[#allocation5 + $0x1a0] sm:$0xff]
    %v166 = vld [vmem:[#allocation5 + $0x1a8] sm:$0xff]
    %v167 = vld [vmem:[#allocation5 + $0x1b0] sm:$0xff]
    %v168 = vld [vmem:[#allocation5 + $0x1b8] sm:$0xff]
    %v169 = vld [vmem:[#allocation5 + $0x1c0] sm:$0xff]
    %v170 = vld [vmem:[#allocation5 + $0x1c8] sm:$0xff]
    %v171 = vld [vmem:[#allocation5 + $0x1d0] sm:$0xff]
    %v172 = vld [vmem:[#allocation5 + $0x1d8] sm:$0xff]
    %v173 = vld [vmem:[#allocation5 + $0x1e0] sm:$0xff]
    %v174 = vld [vmem:[#allocation5 + $0x1e8] sm:$0xff]
    %v175 = vld [vmem:[#allocation5 + $0x1f0] sm:$0xff]
    %v176 = vld [vmem:[#allocation5 + $0x1f8] sm:$0xff]
    %v177 = vld [vmem:[#allocation5 + $0x200] sm:$0xff]
    %v178 = vld [vmem:[#allocation5 + $0x208] sm:$0xff]
    %v179 = vld [vmem:[#allocation5 + $0x210] sm:$0xff]
    %v180 = vld [vmem:[#allocation5 + $0x218] sm:$0xff]
    %v181 = vld [vmem:[#allocation5 + $0x220] sm:$0xff]
    %v182 = vld [vmem:[#allocation5 + $0x228] sm:$0xff]
    %v183 = vld [vmem:[#allocation5 + $0x230] sm:$0xff]
    %v184 = vld [vmem:[#allocation5 + $0x238] sm:$0xff]
    %s185 = scalar_lea.vmem [#allocation7], 1
    %v186 = vld [vmem:[%s185] ss:$8 sm:$0x3]
    %v188 = vperm.slane %v186, 0
    %v189 = vperm.slane %v186, 1
    %192 = vmatpush.msra.mxu0 %v151
    %193 = vmatpush.msra.mxu0 %v149
    %194 = vmatpush.msra.mxu0 %v147
    %195 = vmatpush.msra.mxu0 %v145
    %196 = vmatpush.msra.mxu0 %v143
    %197 = vmatpush.msra.mxu0 %v141
    %198 = vmatpush.msra.mxu0 %v139
    %199 = vmatpush.msra.mxu0 %v137
    %200 = vmatpush.msra.mxu0 %v135
    %201 = vmatpush.msra.mxu0 %v133
    %202 = vmatpush.msra.mxu0 %v131
    %203 = vmatpush.msra.mxu0 %v129
    %204 = vmatpush.msra.mxu0 %v127
    %205 = vmatpush.msra.mxu0 %v125
    %206 = vmatpush.msra.mxu0 %v123
    %207 = vmatpush.msra.mxu0 %v121
    %208 = vmatmul.f32.gmra.mxu0 %v119
    %v209 = vpop.f32.mrf.mxu0
    %v210 = vadd.f32 %v188, %v209
    %211 = vdwg.mxu0
    %212 = vmatpush.msra.mxu0 %v183
    %213 = vmatpush.msra.mxu0 %v181
    %214 = vmatpush.msra.mxu0 %v179
    %215 = vmatpush.msra.mxu0 %v177
    %216 = vmatpush.msra.mxu0 %v175
    %217 = vmatpush.msra.mxu0 %v173
    %218 = vmatpush.msra.mxu0 %v171
    %219 = vmatpush.msra.mxu0 %v169
    %220 = vmatpush.msra.mxu0 %v167
    %221 = vmatpush.msra.mxu0 %v165
    %222 = vmatpush.msra.mxu0 %v163
    %223 = vmatpush.msra.mxu0 %v161
    %224 = vmatpush.msra.mxu0 %v159
    %225 = vmatpush.msra.mxu0 %v157
    %226 = vmatpush.msra.mxu0 %v155
    %227 = vmatpush.msra.mxu0 %v153
    %228 = vmatmul.f32.gmra.mxu0 %v120
    %v229 = vpop.f32.mrf.mxu0
    %v230 = vadd.f32 %v210, %v229
    %231 = vdwg.mxu0
    %232 = vmatpush.msra.mxu0 %v152
    %233 = vmatpush.msra.mxu0 %v150
    %234 = vmatpush.msra.mxu0 %v148
    %235 = vmatpush.msra.mxu0 %v146
    %236 = vmatpush.msra.mxu0 %v144
    %237 = vmatpush.msra.mxu0 %v142
    %238 = vmatpush.msra.mxu0 %v140
    %239 = vmatpush.msra.mxu0 %v138
    %240 = vmatpush.msra.mxu0 %v136
    %241 = vmatpush.msra.mxu0 %v134
    %242 = vmatpush.msra.mxu0 %v132
    %243 = vmatpush.msra.mxu0 %v130
    %244 = vmatpush.msra.mxu0 %v128
    %245 = vmatpush.msra.mxu0 %v126
    %246 = vmatpush.msra.mxu0 %v124
    %247 = vmatpush.msra.mxu0 %v122
    %248 = vmatmul.f32.gmra.mxu0 %v119
    %v249 = vpop.f32.mrf.mxu0
    %v250 = vadd.f32 %v189, %v249
    %251 = vdwg.mxu0
    %252 = vmatpush.msra.mxu0 %v184
    %253 = vmatpush.msra.mxu0 %v182
    %254 = vmatpush.msra.mxu0 %v180
    %255 = vmatpush.msra.mxu0 %v178
    %256 = vmatpush.msra.mxu0 %v176
    %257 = vmatpush.msra.mxu0 %v174
    %258 = vmatpush.msra.mxu0 %v172
    %259 = vmatpush.msra.mxu0 %v170
    %260 = vmatpush.msra.mxu0 %v168
    %261 = vmatpush.msra.mxu0 %v166
    %262 = vmatpush.msra.mxu0 %v164
    %263 = vmatpush.msra.mxu0 %v162
    %264 = vmatpush.msra.mxu0 %v160
    %265 = vmatpush.msra.mxu0 %v158
    %266 = vmatpush.msra.mxu0 %v156
    %267 = vmatpush.msra.mxu0 %v154
    %268 = vmatmul.f32.gmra.mxu0 %v120
    %v269 = vpop.f32.mrf.mxu0
    %v270 = vadd.f32 %v250, %v269
    %271 = vdwg.mxu0
    %vm272 = vcmp.gt.f32.partialorder %v230, 0.0
    %vm273 = vcmp.gt.f32.partialorder %v270, 0.0
    %v274 = vmul.f32 %v230, 0.01
    %v275 = vmul.f32 %v270, 0.01
    %v276 = vsel %vm272, %v230, %v274
    %v277 = vsel %vm273, %v270, %v275
    %v278 = vld [vmem:[#allocation5 + $0x240] sm:$0xff]
    %v279 = vld [vmem:[#allocation5 + $0x250] sm:$0xff]
    %v280 = vld [vmem:[#allocation5 + $0x260] sm:$0xff]
    %v281 = vld [vmem:[#allocation5 + $0x270] sm:$0xff]
    %v282 = vld [vmem:[#allocation5 + $0x280] sm:$0xff]
    %v283 = vld [vmem:[#allocation5 + $0x290] sm:$0xff]
    %v284 = vld [vmem:[#allocation5 + $0x2a0] sm:$0xff]
    %v285 = vld [vmem:[#allocation5 + $0x2b0] sm:$0xff]
    %v286 = vld [vmem:[#allocation5 + $0x2c0] sm:$0xff]
    %v287 = vld [vmem:[#allocation5 + $0x2d0] sm:$0xff]
    %v288 = vld [vmem:[#allocation5 + $0x2e0] sm:$0xff]
    %v289 = vld [vmem:[#allocation5 + $0x2f0] sm:$0xff]
    %v290 = vld [vmem:[#allocation5 + $0x300] sm:$0xff]
    %v291 = vld [vmem:[#allocation5 + $0x310] sm:$0xff]
    %v292 = vld [vmem:[#allocation5 + $0x320] sm:$0xff]
    %v293 = vld [vmem:[#allocation5 + $0x330] sm:$0xff]
    %v294 = vld [vmem:[#allocation5 + $0x340] sm:$0xff]
    %v295 = vld [vmem:[#allocation5 + $0x350] sm:$0xff]
    %v296 = vld [vmem:[#allocation5 + $0x360] sm:$0xff]
    %v297 = vld [vmem:[#allocation5 + $0x370] sm:$0xff]
    %v298 = vld [vmem:[#allocation5 + $0x380] sm:$0xff]
    %v299 = vld [vmem:[#allocation5 + $0x390] sm:$0xff]
    %v300 = vld [vmem:[#allocation5 + $0x3a0] sm:$0xff]
    %v301 = vld [vmem:[#allocation5 + $0x3b0] sm:$0xff]
    %v302 = vld [vmem:[#allocation5 + $0x3c0] sm:$0xff]
    %v303 = vld [vmem:[#allocation5 + $0x3d0] sm:$0xff]
    %v304 = vld [vmem:[#allocation5 + $0x3e0] sm:$0xff]
    %v305 = vld [vmem:[#allocation5 + $0x3f0] sm:$0xff]
    %v306 = vld [vmem:[#allocation5 + $0x400] sm:$0xff]
    %v307 = vld [vmem:[#allocation5 + $0x410] sm:$0xff]
    %v308 = vld [vmem:[#allocation5 + $0x420] sm:$0xff]
    %v309 = vld [vmem:[#allocation5 + $0x430] sm:$0xff]
    %v310 = vld [vmem:[#allocation7 + $0x2] ss:$0 sm:$0xff]
    %311 = vmatpush.msra.mxu0 %v293
    %312 = vmatpush.msra.mxu0 %v292
    %313 = vmatpush.msra.mxu0 %v291
    %314 = vmatpush.msra.mxu0 %v290
    %315 = vmatpush.msra.mxu0 %v289
    %316 = vmatpush.msra.mxu0 %v288
    %317 = vmatpush.msra.mxu0 %v287
    %318 = vmatpush.msra.mxu0 %v286
    %319 = vmatpush.msra.mxu0 %v285
    %320 = vmatpush.msra.mxu0 %v284
    %321 = vmatpush.msra.mxu0 %v283
    %322 = vmatpush.msra.mxu0 %v282
    %323 = vmatpush.msra.mxu0 %v281
    %324 = vmatpush.msra.mxu0 %v280
    %325 = vmatpush.msra.mxu0 %v279
    %326 = vmatpush.msra.mxu0 %v278
    %327 = vmatmul.f32.gmra.mxu0 %v276
    %v328 = vpop.f32.mrf.mxu0
    %v329 = vadd.f32 %v310, %v328
    %330 = vdwg.mxu0
    %331 = vmatpush.msra.mxu0 %v309
    %332 = vmatpush.msra.mxu0 %v308
    %333 = vmatpush.msra.mxu0 %v307
    %334 = vmatpush.msra.mxu0 %v306
    %335 = vmatpush.msra.mxu0 %v305
    %336 = vmatpush.msra.mxu0 %v304
    %337 = vmatpush.msra.mxu0 %v303
    %338 = vmatpush.msra.mxu0 %v302
    %339 = vmatpush.msra.mxu0 %v301
    %340 = vmatpush.msra.mxu0 %v300
    %341 = vmatpush.msra.mxu0 %v299
    %342 = vmatpush.msra.mxu0 %v298
    %343 = vmatpush.msra.mxu0 %v297
    %344 = vmatpush.msra.mxu0 %v296
    %345 = vmatpush.msra.mxu0 %v295
    %346 = vmatpush.msra.mxu0 %v294
    %347 = vmatmul.f32.gmra.mxu0 %v277
    %v348 = vpop.f32.mrf.mxu0
    %v349 = vadd.f32 %v329, %v348
    %350 = vdwg.mxu0
    %vm351 = vcmp.gt.f32.partialorder %v349, 0.0
    %v352 = vmul.f32 %v349, 0.01
    %v353 = vsel %vm351, %v349, %v352
    %v354 = vld [vmem:[#allocation5 + $0x248] sm:$0xff]
    %v355 = vld [vmem:[#allocation5 + $0x258] sm:$0xff]
    %v356 = vld [vmem:[#allocation5 + $0x268] sm:$0xff]
    %v357 = vld [vmem:[#allocation5 + $0x278] sm:$0xff]
    %v358 = vld [vmem:[#allocation5 + $0x288] sm:$0xff]
    %v359 = vld [vmem:[#allocation5 + $0x298] sm:$0xff]
    %v360 = vld [vmem:[#allocation5 + $0x2a8] sm:$0xff]
    %v361 = vld [vmem:[#allocation5 + $0x2b8] sm:$0xff]
    %v362 = vld [vmem:[#allocation5 + $0x2c8] sm:$0xff]
    %v363 = vld [vmem:[#allocation5 + $0x2d8] sm:$0xff]
    %v364 = vld [vmem:[#allocation5 + $0x2e8] sm:$0xff]
    %v365 = vld [vmem:[#allocation5 + $0x2f8] sm:$0xff]
    %v366 = vld [vmem:[#allocation5 + $0x308] sm:$0xff]
    %v367 = vld [vmem:[#allocation5 + $0x318] sm:$0xff]
    %v368 = vld [vmem:[#allocation5 + $0x328] sm:$0xff]
    %v369 = vld [vmem:[#allocation5 + $0x338] sm:$0xff]
    %v370 = vld [vmem:[#allocation7 + $0x3] ss:$0 sm:$0xff]
    %371 = vmatpush.msra.mxu0 %v369
    %372 = vmatpush.msra.mxu0 %v368
    %373 = vmatpush.msra.mxu0 %v367
    %374 = vmatpush.msra.mxu0 %v366
    %375 = vmatpush.msra.mxu0 %v365
    %376 = vmatpush.msra.mxu0 %v364
    %377 = vmatpush.msra.mxu0 %v363
    %378 = vmatpush.msra.mxu0 %v362
    %379 = vmatpush.msra.mxu0 %v361
    %380 = vmatpush.msra.mxu0 %v360
    %381 = vmatpush.msra.mxu0 %v359
    %382 = vmatpush.msra.mxu0 %v358
    %383 = vmatpush.msra.mxu0 %v357
    %384 = vmatpush.msra.mxu0 %v356
    %385 = vmatpush.msra.mxu0 %v355
    %386 = vmatpush.msra.mxu0 %v354
    %387 = vmatmul.f32.gmra.mxu0 %v353
    %v388 = vpop.f32.mrf.mxu0
    %v389 = vadd.f32 %v370, %v388
    %390 = vdwg.mxu0
    %vm391 = vcmp.gt.f32.partialorder %v389, 0.0
    %v392 = vmul.f32 %v389, 0.01
    %v393 = vsel %vm391, %v389, %v392
    %v394 = vld [vmem:[#allocation5 + $0x348] sm:$0xff]
    %v395 = vld [vmem:[#allocation5 + $0x358] sm:$0xff]
    %v396 = vld [vmem:[#allocation5 + $0x368] sm:$0xff]
    %v397 = vld [vmem:[#allocation5 + $0x378] sm:$0xff]
    %v398 = vld [vmem:[#allocation5 + $0x388] sm:$0xff]
    %v399 = vld [vmem:[#allocation5 + $0x398] sm:$0xff]
    %v400 = vld [vmem:[#allocation5 + $0x3a8] sm:$0xff]
    %v401 = vld [vmem:[#allocation5 + $0x3b8] sm:$0xff]
    %v402 = vld [vmem:[#allocation5 + $0x3c8] sm:$0xff]
    %v403 = vld [vmem:[#allocation5 + $0x3d8] sm:$0xff]
    %v404 = vld [vmem:[#allocation5 + $0x3e8] sm:$0xff]
    %v405 = vld [vmem:[#allocation5 + $0x3f8] sm:$0xff]
    %v406 = vld [vmem:[#allocation5 + $0x408] sm:$0xff]
    %v407 = vld [vmem:[#allocation5 + $0x418] sm:$0xff]
    %v408 = vld [vmem:[#allocation5 + $0x428] sm:$0xff]
    %v409 = vld [vmem:[#allocation5 + $0x438] sm:$0xff]
    %v410 = vld [vmem:[#allocation7 + $0x4] ss:$0 sm:$0xff]
    %411 = vmatpush.msra.mxu0 %v409
    %412 = vmatpush.msra.mxu0 %v408
    %413 = vmatpush.msra.mxu0 %v407
    %414 = vmatpush.msra.mxu0 %v406
    %415 = vmatpush.msra.mxu0 %v405
    %416 = vmatpush.msra.mxu0 %v404
    %417 = vmatpush.msra.mxu0 %v403
    %418 = vmatpush.msra.mxu0 %v402
    %419 = vmatpush.msra.mxu0 %v401
    %420 = vmatpush.msra.mxu0 %v400
    %421 = vmatpush.msra.mxu0 %v399
    %422 = vmatpush.msra.mxu0 %v398
    %423 = vmatpush.msra.mxu0 %v397
    %424 = vmatpush.msra.mxu0 %v396
    %425 = vmatpush.msra.mxu0 %v395
    %426 = vmatpush.msra.mxu0 %v394
    %427 = vmatmul.f32.gmra.mxu0 %v393
    %v428 = vpop.f32.mrf.mxu0
    %v429 = vadd.f32 %v410, %v428
    %430 = vdwg.mxu0
    %431 = vst [vmem:[#allocation8] sm:$0xff] %v429
    // Predicated region
    $region26: #{dqn_forward.1} parent=1 // pred_check
      _
    $region27: #{dqn_forward.1} parent=1 // pred_check_branch
      %433 = sbr.rel (0) target = $region29
    $region28: #{dqn_forward.1} parent=1 // pred_region
      %435 = vsyncadd [#allocation4], 0
      %s437 = sshll.u32 [#allocation8], 4
      %s438 = int_to_ptr.vmem [resolvable:$true] %s437
      %s439 = sshll.u32 %s3, 4
      %s440 = int_to_ptr.hbm [resolvable:$true] %s439
      %442 = dma.vmem_to_hbm [thread:$0]  %s438, 128, %s440, [#allocation4]
    $region29: #{dqn_forward.1} parent=1 // pred_fallthru
      _
    // Predicated region
    $region30: #{dqn_forward.1} parent=1 // pred_check
      _
    $region31: #{dqn_forward.1} parent=1 // pred_check_branch
      %444 = sbr.rel (0) target = $region33
    $region32: #{dqn_forward.1} parent=1 // pred_region
      %446 = dma.done [#allocation4], 128
    $region33: #{dqn_forward.1} parent=1 // pred_fallthru
      _
    %447 = vsyncpa [#allocation3], 1
    %448 = vsyncpa [#allocation6], 1
    %449 = vsyncpa [#allocation4], 1

</llo_original>
